<compile_context>
chip_gen: v6e
topology: v6e:2x2x1
jax: 0.10.0
libtpu: 0.0.40
codegen_flags: <defaults>
</compile_context>

<pallas_src>
import functools
import math
import random

import jax
import jax.numpy as jnp
from jax.experimental import pallas as pl
from jax.experimental.pallas import tpu as pltpu


def _pair(x):
    return x if isinstance(x, tuple) else (x, x)


# ----------------------------- fused Pallas kernel ------------------------- #
def _fused_svd_stack_kernel(*refs, schedule, n_left, n_right):
    """refs = (x, lw*, lb*, rw*, rb*, out).

    `schedule` is a static tuple of ("L", i) / ("R", i) steps that is unrolled
    at trace time (same randomized interleaving as the PyTorch forward).
    """
    x_ref = refs[0]
    idx = 1
    lw_refs = refs[idx:idx + n_left];  idx += n_left
    lb_refs = refs[idx:idx + n_left];  idx += n_left
    rw_refs = refs[idx:idx + n_right]; idx += n_right
    rb_refs = refs[idx:idx + n_right]; idx += n_right
    o_ref = refs[idx]

    x = x_ref[...].astype(jnp.float32)
    for side, i in schedule:
        if side == "L":
            # y = relu(W_l @ x + b_l); b_l:(oh,1) broadcasts over columns.
            y = jnp.dot(lw_refs[i][...], x, preferred_element_type=jnp.float32)
            y = y + lb_refs[i][...]
        else:
            # y = relu(x @ W_r + b_r); b_r:(1,ow) broadcasts over rows.
            y = jnp.dot(x, rw_refs[i][...], preferred_element_type=jnp.float32)
            y = y + rb_refs[i][...]
        x = jnp.maximum(y, 0.0)
    o_ref[...] = x.astype(o_ref.dtype)


def fused_svd_forward(x, lweights, lbiases, rweights, rbiases, schedule):
    """Run the whole stack (given a fixed schedule) in one pallas_call."""
    n_left, n_right = len(lweights), len(rweights)
    if n_left == 0 and n_right == 0:
        return x
    out_rows = lweights[-1].shape[0] if n_left else x.shape[0]
    out_cols = rweights[-1].shape[1] if n_right else x.shape[1]

    operands = [x, *lweights, *lbiases, *rweights, *rbiases]
    vmem_spec = pl.BlockSpec(memory_space=pltpu.MemorySpace.VMEM)
    kernel = functools.partial(
        _fused_svd_stack_kernel,
        schedule=tuple(schedule), n_left=n_left, n_right=n_right)

    return pl.pallas_call(
        kernel,
        out_shape=jax.ShapeDtypeStruct((out_rows, out_cols), jnp.float32),
        in_specs=[vmem_spec] * len(operands),
        out_specs=vmem_spec,
    )(*operands)


def reference_forward(x, lweights, lbiases, rweights, rbiases, schedule):
    """Pure-jnp reference for correctness checking."""
    x = x.astype(jnp.float32)
    for side, i in schedule:
        if side == "L":
            x = jnp.maximum(lweights[i] @ x + lbiases[i], 0.0)
        else:
            x = jnp.maximum(x @ rweights[i] + rbiases[i], 0.0)
    return x


# --------------------------- module re-implementation ---------------------- #
class StackedSVDLayerPallas:
    """JAX/Pallas port of StackedSVDLayer (bias=True, dropout=None)."""

    def __init__(self, *sizes, bias=True, key=None):
        # TODO(synk): F.dropout with a non-None probability is stochastic
        # (training-mode RNG); only dropout=None (the module default) is
        # reproduced here.
        sizes = [_pair(s) for s in sizes]
        if key is None:
            key = jax.random.PRNGKey(0)
        self.lweights, self.lbiases = [], []
        self.rweights, self.rbiases = [], []
        for (ih, iw), (oh, ow) in zip(sizes, sizes[1:]):
            key, k1, k2, k3, k4 = jax.random.split(key, 5)
            # Left: weight (oh, ih); kaiming_uniform_(a=sqrt(5)) with
            # fan_in = ih -> U(-1/sqrt(ih), 1/sqrt(ih)).  Bias bound follows
            # the module's 1/sqrt(fan_in/2) = sqrt(2/fan_in).
            lw = jax.random.uniform(
                k1, (oh, ih), jnp.float32,
                minval=-1.0 / math.sqrt(ih), maxval=1.0 / math.sqrt(ih))
            lb = jax.random.uniform(
                k2, (oh, 1), jnp.float32,
                minval=-math.sqrt(2.0 / ih), maxval=math.sqrt(2.0 / ih))
            # Right: weight (iw, ow); fan_in = weight.size(1) = ow.
            rw = jax.random.uniform(
                k3, (iw, ow), jnp.float32,
                minval=-1.0 / math.sqrt(ow), maxval=1.0 / math.sqrt(ow))
            rb = jax.random.uniform(
                k4, (1, ow), jnp.float32,
                minval=-math.sqrt(2.0 / ow), maxval=math.sqrt(2.0 / ow))
            if not bias:
                lb = jnp.zeros((oh, 1), jnp.float32)
                rb = jnp.zeros((1, ow), jnp.float32)
            self.lweights.append(lw)
            self.lbiases.append(lb)
            self.rweights.append(rw)
            self.rbiases.append(rb)
        self._fwd_cache = {}

    def _draw_schedule(self):
        # Same randomized interleaving of left/right stages as the PyTorch
        # forward (consumes python `random` in the same order).
        il, ir = 0, 0
        nl, nr = len(self.lweights), len(self.rweights)
        sched = []
        while True:
            if il == nl:
                sched.extend(("R", i) for i in range(ir, nr))
                break
            if ir == nr:
                sched.extend(("L", i) for i in range(il, nl))
                break
            lc, rc = nl - il, nr - ir
            if random.random() < lc / (lc + rc):
                sched.append(("L", il)); il += 1
            else:
                sched.append(("R", ir)); ir += 1
        return tuple(sched)

    def forward_with_schedule(self, x, schedule):
        fwd = self._fwd_cache.get(schedule)
        if fwd is None:
            lw, lb = tuple(self.lweights), tuple(self.lbiases)
            rw, rb = tuple(self.rweights), tuple(self.rbiases)

            @jax.jit
            def fwd(xv):
                return fused_svd_forward(xv, lw, lb, rw, rb, schedule)

            self._fwd_cache[schedule] = fwd
        return fwd(x)

    def __call__(self, x):
        # PyTorch re-randomizes the interleaving every forward; we draw a
        # schedule per call but cache one fused-kernel trace per distinct
        # schedule (only C(nl+nr, nl) of them exist).
        return self.forward_with_schedule(x, self._draw_schedule())


# ---------------------------------- main ------------------------------------ #
if __name__ == "__main__":
    random.seed(0)  # deterministic left/right schedule

    # StackedSVDLayer((16, 32), (24, 48), (8, 16)):
    #   2 left layers: (24,16), (8,24)   2 right layers: (32,48), (48,16)
    sizes = [(16, 32), (24, 48), (8, 16)]
    model = StackedSVDLayerPallas(*sizes, key=jax.random.PRNGKey(0))

    x = jax.random.normal(jax.random.PRNGKey(0), (16, 32), dtype=jnp.float32)

    schedule = model._draw_schedule()
    y = model.forward_with_schedule(x, schedule)
    y = jax.block_until_ready(y)

    assert y.shape == (8, 16), y.shape
    assert bool(jnp.all(y >= 0.0))  # final relu

    # Correctness check against a pure-jnp reference of the same schedule.
    y_ref = reference_forward(x, model.lweights, model.lbiases,
                              model.rweights, model.rbiases, schedule)
    assert jnp.allclose(y, y_ref, rtol=1e-5, atol=1e-5), \
        float(jnp.max(jnp.abs(y - y_ref)))

    print("KERNEL_OK")
</pallas_src>

<mosaic_0001>
module attributes {stable_mosaic.version = 11 : i64} {
  func.func @_fused_svd_stack_kernel(%arg0: memref<16x32xf32, #tpu.memory_space<vmem>>, %arg1: memref<24x16xf32, #tpu.memory_space<vmem>>, %arg2: memref<8x24xf32, #tpu.memory_space<vmem>>, %arg3: memref<24x1xf32, #tpu.memory_space<vmem>>, %arg4: memref<8x1xf32, #tpu.memory_space<vmem>>, %arg5: memref<32x48xf32, #tpu.memory_space<vmem>>, %arg6: memref<48x16xf32, #tpu.memory_space<vmem>>, %arg7: memref<1x48xf32, #tpu.memory_space<vmem>>, %arg8: memref<1x16xf32, #tpu.memory_space<vmem>>, %arg9: memref<8x16xf32, #tpu.memory_space<vmem>>) attributes {dimension_semantics = [], scalar_prefetch = 0 : i64, scratch_operands = 0 : i64, tpu.core_type = #tpu.core_type<tc>} {
    %c0 = arith.constant 0 : index
    %c0_0 = arith.constant 0 : index
    %0 = vector.load %arg0[%c0, %c0_0] : memref<16x32xf32, #tpu.memory_space<vmem>>, vector<16x32xf32>
    %c0_1 = arith.constant 0 : index
    %c0_2 = arith.constant 0 : index
    %1 = vector.load %arg5[%c0_1, %c0_2] : memref<32x48xf32, #tpu.memory_space<vmem>>, vector<32x48xf32>
    %cst = arith.constant dense<0.000000e+00> : vector<16x48xf32>
    %2 = tpu.matmul %0, %1, %cst {dimension_numbers = #tpu.dot_dimension_numbers<[1], [0], [0], [1], [0, 0, 1, 1], [], []>} : vector<16x32xf32>, vector<32x48xf32>, vector<16x48xf32> -> vector<16x48xf32>
    %c0_3 = arith.constant 0 : index
    %c0_4 = arith.constant 0 : index
    %3 = vector.load %arg7[%c0_3, %c0_4] : memref<1x48xf32, #tpu.memory_space<vmem>>, vector<1x48xf32>
    %4 = vector.broadcast %3 : vector<1x48xf32> to vector<16x48xf32>
    %5 = arith.addf %2, %4 : vector<16x48xf32>
    %cst_5 = arith.constant 0.000000e+00 : f32
    %6 = vector.broadcast %cst_5 : f32 to vector<16x48xf32>
    %7 = arith.maximumf %5, %6 : vector<16x48xf32>
    %c0_6 = arith.constant 0 : index
    %c0_7 = arith.constant 0 : index
    %8 = vector.load %arg6[%c0_6, %c0_7] : memref<48x16xf32, #tpu.memory_space<vmem>>, vector<48x16xf32>
    %cst_8 = arith.constant dense<0.000000e+00> : vector<16x16xf32>
    %9 = tpu.matmul %7, %8, %cst_8 {dimension_numbers = #tpu.dot_dimension_numbers<[1], [0], [0], [1], [0, 0, 1, 1], [], []>} : vector<16x48xf32>, vector<48x16xf32>, vector<16x16xf32> -> vector<16x16xf32>
    %c0_9 = arith.constant 0 : index
    %c0_10 = arith.constant 0 : index
    %10 = vector.load %arg8[%c0_9, %c0_10] : memref<1x16xf32, #tpu.memory_space<vmem>>, vector<1x16xf32>
    %11 = vector.broadcast %10 : vector<1x16xf32> to vector<16x16xf32>
    %12 = arith.addf %9, %11 : vector<16x16xf32>
    %cst_11 = arith.constant 0.000000e+00 : f32
    %13 = vector.broadcast %cst_11 : f32 to vector<16x16xf32>
    %14 = arith.maximumf %12, %13 : vector<16x16xf32>
    %c0_12 = arith.constant 0 : index
    %c0_13 = arith.constant 0 : index
    %15 = vector.load %arg1[%c0_12, %c0_13] : memref<24x16xf32, #tpu.memory_space<vmem>>, vector<24x16xf32>
    %cst_14 = arith.constant dense<0.000000e+00> : vector<24x16xf32>
    %16 = tpu.matmul %15, %14, %cst_14 {dimension_numbers = #tpu.dot_dimension_numbers<[1], [0], [0], [1], [0, 0, 1, 1], [], []>} : vector<24x16xf32>, vector<16x16xf32>, vector<24x16xf32> -> vector<24x16xf32>
    %c0_15 = arith.constant 0 : index
    %c0_16 = arith.constant 0 : index
    %17 = vector.load %arg3[%c0_15, %c0_16] : memref<24x1xf32, #tpu.memory_space<vmem>>, vector<24x1xf32>
    %18 = vector.broadcast %17 : vector<24x1xf32> to vector<24x16xf32>
    %19 = arith.addf %16, %18 : vector<24x16xf32>
    %cst_17 = arith.constant 0.000000e+00 : f32
    %20 = vector.broadcast %cst_17 : f32 to vector<24x16xf32>
    %21 = arith.maximumf %19, %20 : vector<24x16xf32>
    %c0_18 = arith.constant 0 : index
    %c0_19 = arith.constant 0 : index
    %22 = vector.load %arg2[%c0_18, %c0_19] : memref<8x24xf32, #tpu.memory_space<vmem>>, vector<8x24xf32>
    %cst_20 = arith.constant dense<0.000000e+00> : vector<8x16xf32>
    %23 = tpu.matmul %22, %21, %cst_20 {dimension_numbers = #tpu.dot_dimension_numbers<[1], [0], [0], [1], [0, 0, 1, 1], [], []>} : vector<8x24xf32>, vector<24x16xf32>, vector<8x16xf32> -> vector<8x16xf32>
    %c0_21 = arith.constant 0 : index
    %c0_22 = arith.constant 0 : index
    %24 = vector.load %arg4[%c0_21, %c0_22] : memref<8x1xf32, #tpu.memory_space<vmem>>, vector<8x1xf32>
    %25 = vector.broadcast %24 : vector<8x1xf32> to vector<8x16xf32>
    %26 = arith.addf %23, %25 : vector<8x16xf32>
    %cst_23 = arith.constant 0.000000e+00 : f32
    %27 = vector.broadcast %cst_23 : f32 to vector<8x16xf32>
    %28 = arith.maximumf %26, %27 : vector<8x16xf32>
    %c0_24 = arith.constant 0 : index
    %c0_25 = arith.constant 0 : index
    %29 = vector.load %arg9[%c0_24, %c0_25] : memref<8x16xf32, #tpu.memory_space<vmem>>, vector<8x16xf32>
    tpu.vector_store %arg9[%c0_24, %c0_25], %28 {strides = array<i32>} : memref<8x16xf32, #tpu.memory_space<vmem>>, vector<8x16xf32>,
    return
  }
}

</mosaic_0001>

<llo_original>
// kernel: fwd.1
$region0: #{fwd.1}
  #allocation0 [shape = 'u32[]', space=smem, size = 0x4, offset = 0x4, fixed_abs, tag = 'smem constant byte address 0x4 - core index']
  #allocation1 [shape = 'u32[144,128]{1,0:T(1,128)}', space=vmem, size = 0x12000, scoped, tag = 'internal scratch']
  %s0 = inlined_call_operand.hbm [shape: f32[16,32], index: 0, kind: input, shape index: {}]
  %s1 = inlined_call_operand.hbm [shape: f32[24,16], index: 1, kind: input, shape index: {}]
  %s2 = inlined_call_operand.hbm [shape: f32[8,24], index: 2, kind: input, shape index: {}]
  %s3 = inlined_call_operand.hbm [shape: f32[24,1], index: 3, kind: input, shape index: {}]
  %s4 = inlined_call_operand.hbm [shape: f32[8,1], index: 4, kind: input, shape index: {}]
  %s5 = inlined_call_operand.hbm [shape: f32[32,48], index: 5, kind: input, shape index: {}]
  %s6 = inlined_call_operand.hbm [shape: f32[48,16], index: 6, kind: input, shape index: {}]
  %s7 = inlined_call_operand.vmem [shape: f32[1,48], index: 7, kind: input, shape index: {}]
  %s8 = inlined_call_operand.vmem [shape: f32[1,16], index: 8, kind: input, shape index: {}]
  %s9 = inlined_call_operand.hbm [shape: f32[8,16], index: 9, kind: output, shape index: {}]
  %s10 = sld [smem:[#allocation0]]
  $region74: #{fwd.1} parent=0
    _
  %s12 = ssub.s32 1, %s10
  %s13 = scalar_select 0, %s12, %s10
  $region1: #{fwd.1} parent=0
    #allocation2 [shape = 'u8[8192]{0}', space=vmem, size = 0x2000, scoped, tag = 'input window, operand 0, single buffered']
    #allocation3 [shape = 's32[1]{0}', space=sflag, size = 0x4, scoped, tag = 'scoped memory for fwd.1']
    #allocation4 [shape = 's32[1]{0}', space=sflag, size = 0x4, scoped, tag = 'scoped memory for fwd.1']
    #allocation5 [shape = 'u8[12288]{0}', space=vmem, size = 0x3000, scoped, tag = 'input window, operand 1, single buffered']
    #allocation6 [shape = 's32[1]{0}', space=sflag, size = 0x4, scoped, tag = 'scoped memory for fwd.1']
    #allocation7 [shape = 'u8[4096]{0}', space=vmem, size = 0x1000, scoped, tag = 'input window, operand 2, single buffered']
    #allocation8 [shape = 'u8[12288]{0}', space=vmem, size = 0x3000, scoped, tag = 'input window, operand 3, single buffered']
    #allocation9 [shape = 's32[1]{0}', space=sflag, size = 0x4, scoped, tag = 'scoped memory for fwd.1']
    #allocation10 [shape = 'u8[4096]{0}', space=vmem, size = 0x1000, scoped, tag = 'input window, operand 4, single buffered']
    #allocation11 [shape = 'u8[16384]{0}', space=vmem, size = 0x4000, scoped, tag = 'input window, operand 5, single buffered']
    #allocation12 [shape = 's32[1]{0}', space=sflag, size = 0x4, scoped, tag = 'scoped memory for fwd.1']
    #allocation13 [shape = 'u8[24576]{0}', space=vmem, size = 0x6000, scoped, tag = 'input window, operand 6, single buffered']
    #allocation14 [shape = 'u8[4096]{0}', space=vmem, size = 0x1000, scoped, tag = 'output window, operand 0, single buffered']
    %14 = vsyncpa [#allocation3], 0
    %15 = vsyncpa [#allocation6], 0
    %16 = vsyncpa [#allocation9], 0
    %17 = vsyncpa [#allocation12], 0
    %18 = vsyncpa [#allocation4], 0
    // Predicated region
    $region2: #{fwd.1} parent=1 // pred_check
      _
    $region3: #{fwd.1} parent=1 // pred_check_branch
      %20 = sbr.rel (0) target = $region5
    $region4: #{fwd.1} parent=1 // pred_region
      %s22 = ssub.s32 256, 256
      %23 = vsyncadd [#allocation3], %s22
      %s24 = sshll.u32 [#allocation2], 4
      %s25 = int_to_ptr.vmem [resolvable:$true] %s24
      %30 = dma.hbm_to_vmem [thread:$0]  %s0, 256, %s25, [#allocation3], 128, 128, 8
    $region5: #{fwd.1} parent=1 // pred_fallthru
      _
    // Predicated region
    $region6: #{fwd.1} parent=1 // pred_check
      _
    $region7: #{fwd.1} parent=1 // pred_check_branch
      %32 = sbr.rel (0) target = $region9
    $region8: #{fwd.1} parent=1 // pred_region
      %s34 = ssub.s32 384, 384
      %35 = vsyncadd [#allocation6], %s34
      %s36 = sshll.u32 [#allocation5], 4
      %s37 = int_to_ptr.vmem [resolvable:$true] %s36
      %42 = dma.hbm_to_vmem [thread:$0]  %s1, 384, %s37, [#allocation6], 128, 128, 8
    $region9: #{fwd.1} parent=1 // pred_fallthru
      _
    // Predicated region
    $region10: #{fwd.1} parent=1 // pred_check
      _
    $region11: #{fwd.1} parent=1 // pred_check_branch
      %44 = sbr.rel (0) target = $region13
    $region12: #{fwd.1} parent=1 // pred_region
      %s46 = ssub.s32 128, 128
      %47 = vsyncadd [#allocation6], %s46
      %s49 = sshll.u32 [#allocation7], 4
      %s50 = int_to_ptr.vmem [resolvable:$true] %s49
      %52 = dma.hbm_to_vmem [thread:$0]  %s2, 128, %s50, [#allocation6]
    $region13: #{fwd.1} parent=1 // pred_fallthru
      _
    // Predicated region
    $region14: #{fwd.1} parent=1 // pred_check
      _
    $region15: #{fwd.1} parent=1 // pred_check_branch
      %54 = sbr.rel (0) target = $region17
    $region16: #{fwd.1} parent=1 // pred_region
      %s56 = ssub.s32 384, 384
      %57 = vsyncadd [#allocation9], %s56
      %s58 = sshll.u32 [#allocation8], 4
      %s59 = int_to_ptr.vmem [resolvable:$true] %s58
      %64 = dma.hbm_to_vmem [thread:$0]  %s3, 384, %s59, [#allocation9], 128, 128, 8
    $region17: #{fwd.1} parent=1 // pred_fallthru
      _
    // Predicated region
    $region18: #{fwd.1} parent=1 // pred_check
      _
    $region19: #{fwd.1} parent=1 // pred_check_branch
      %66 = sbr.rel (0) target = $region21
    $region20: #{fwd.1} parent=1 // pred_region
      %s68 = ssub.s32 128, 128
      %69 = vsyncadd [#allocation9], %s68
      %s71 = sshll.u32 [#allocation10], 4
      %s72 = int_to_ptr.vmem [resolvable:$true] %s71
      %74 = dma.hbm_to_vmem [thread:$0]  %s4, 128, %s72, [#allocation9]
    $region21: #{fwd.1} parent=1 // pred_fallthru
      _
    // Predicated region
    $region22: #{fwd.1} parent=1 // pred_check
      _
    $region23: #{fwd.1} parent=1 // pred_check_branch
      %76 = sbr.rel (0) target = $region25
    $region24: #{fwd.1} parent=1 // pred_region
      %s78 = ssub.s32 512, 512
      %79 = vsyncadd [#allocation12], %s78
      %s80 = sshll.u32 [#allocation11], 4
      %s81 = int_to_ptr.vmem [resolvable:$true] %s80
      %86 = dma.hbm_to_vmem [thread:$0]  %s5, 512, %s81, [#allocation12], 128, 128, 8
    $region25: #{fwd.1} parent=1 // pred_fallthru
      _
    // Predicated region
    $region26: #{fwd.1} parent=1 // pred_check
      _
    $region27: #{fwd.1} parent=1 // pred_check_branch
      %88 = sbr.rel (0) target = $region29
    $region28: #{fwd.1} parent=1 // pred_region
      %s90 = ssub.s32 768, 768
      %91 = vsyncadd [#allocation12], %s90
      %s92 = sshll.u32 [#allocation13], 4
      %s93 = int_to_ptr.vmem [resolvable:$true] %s92
      %98 = dma.hbm_to_vmem [thread:$0]  %s6, 768, %s93, [#allocation12], 128, 128, 8
    $region29: #{fwd.1} parent=1 // pred_fallthru
      _
    // Predicated region
    $region30: #{fwd.1} parent=1 // pred_check
      _
    $region31: #{fwd.1} parent=1 // pred_check_branch
      %100 = sbr.rel (0) target = $region33
    $region32: #{fwd.1} parent=1 // pred_region
      _
    $region33: #{fwd.1} parent=1 // pred_fallthru
      _
    // Predicated region
    $region34: #{fwd.1} parent=1 // pred_check
      _
    $region35: #{fwd.1} parent=1 // pred_check_branch
      %102 = sbr.rel (0) target = $region37
    $region36: #{fwd.1} parent=1 // pred_region
      _
    $region37: #{fwd.1} parent=1 // pred_fallthru
      _
    // Predicated region
    $region38: #{fwd.1} parent=1 // pred_check
      _
    $region39: #{fwd.1} parent=1 // pred_check_branch
      %104 = sbr.rel (0) target = $region41
    $region40: #{fwd.1} parent=1 // pred_region
      %105 = dma.done [#allocation3], 256
    $region41: #{fwd.1} parent=1 // pred_fallthru
      _
    // Predicated region
    $region42: #{fwd.1} parent=1 // pred_check
      _
    $region43: #{fwd.1} parent=1 // pred_check_branch
      %107 = sbr.rel (0) target = $region45
    $region44: #{fwd.1} parent=1 // pred_region
      %108 = dma.done [#allocation6], 384
    $region45: #{fwd.1} parent=1 // pred_fallthru
      _
    // Predicated region
    $region46: #{fwd.1} parent=1 // pred_check
      _
    $region47: #{fwd.1} parent=1 // pred_check_branch
      %110 = sbr.rel (0) target = $region49
    $region48: #{fwd.1} parent=1 // pred_region
      %111 = dma.done [#allocation6], 128
    $region49: #{fwd.1} parent=1 // pred_fallthru
      _
    // Predicated region
    $region50: #{fwd.1} parent=1 // pred_check
      _
    $region51: #{fwd.1} parent=1 // pred_check_branch
      %113 = sbr.rel (0) target = $region53
    $region52: #{fwd.1} parent=1 // pred_region
      %114 = dma.done [#allocation9], 384
    $region53: #{fwd.1} parent=1 // pred_fallthru
      _
    // Predicated region
    $region54: #{fwd.1} parent=1 // pred_check
      _
    $region55: #{fwd.1} parent=1 // pred_check_branch
      %116 = sbr.rel (0) target = $region57
    $region56: #{fwd.1} parent=1 // pred_region
      %117 = dma.done [#allocation9], 128
    $region57: #{fwd.1} parent=1 // pred_fallthru
      _
    // Predicated region
    $region58: #{fwd.1} parent=1 // pred_check
      _
    $region59: #{fwd.1} parent=1 // pred_check_branch
      %119 = sbr.rel (0) target = $region61
    $region60: #{fwd.1} parent=1 // pred_region
      %120 = dma.done [#allocation12], 512
    $region61: #{fwd.1} parent=1 // pred_fallthru
      _
    // Predicated region
    $region62: #{fwd.1} parent=1 // pred_check
      _
    $region63: #{fwd.1} parent=1 // pred_check_branch
      %122 = sbr.rel (0) target = $region65
    $region64: #{fwd.1} parent=1 // pred_region
      %123 = dma.done [#allocation12], 768
    $region65: #{fwd.1} parent=1 // pred_fallthru
      _
    %v124 = vld [vmem:[#allocation2] sm:$0xff]
    %v125 = vld [vmem:[#allocation2 + $0x8] sm:$0xff]
    %v126 = vld [vmem:[#allocation11] sm:$0xff]
    %v127 = vld [vmem:[#allocation11 + $0x8] sm:$0xff]
    %v128 = vld [vmem:[#allocation11 + $0x10] sm:$0xff]
    %v129 = vld [vmem:[#allocation11 + $0x18] sm:$0xff]
    %v130 = vld [vmem:[%s7] sm:$0x1]
    %v132 = vlaneseq
    %v133 = vshrl.u32 %v132, 7
    %v134 = vsub.s32 0, %v133
    %v135 = vrot.slane %v130, %v134
    %vm137 = vcmask 261120
    %v139 = vsel %vm137, %v124, 0
    %v142 = vsel %vm137, %v125, 0
    %144 = vmatprep.subr.mxu0 0.0
    %145 = vmatpush1.msra.mxu0 0.0
    %146 = vmatprep.subr.mxu0 0.0
    %147 = vmatpush1.msra.mxu0 0.0
    %148 = vmatprep.subr.mxu0 0.0
    %149 = vmatpush1.msra.mxu0 0.0
    %150 = vmatprep.subr.mxu0 0.0
    %151 = vmatpush1.msra.mxu0 0.0
    %152 = vmatprep.subr.mxu0 0.0
    %153 = vmatpush1.msra.mxu0 0.0
    %154 = vmatprep.subr.mxu0 0.0
    %155 = vmatpush1.msra.mxu0 0.0
    %156 = vmatprep.subr.mxu0 0.0
    %157 = vmatpush1.msra.mxu0 0.0
    %158 = vmatprep.subr.mxu0 0.0
    %159 = vmatpush1.msra.mxu0 0.0
    %160 = vmatprep.subr.mxu0 0.0
    %161 = vmatpush1.msra.mxu0 0.0
    %162 = vmatprep.subr.mxu0 0.0
    %163 = vmatpush1.msra.mxu0 0.0
    %164 = vmatprep.subr.mxu0 0.0
    %165 = vmatpush1.msra.mxu0 0.0
    %166 = vmatprep.subr.mxu0 0.0
    %167 = vmatpush1.msra.mxu0 0.0
    %168 = vmatprep.subr.mxu0 0.0
    %169 = vmatpush1.msra.mxu0 %v129
    %170 = vmatprep.subr.mxu0 0.0
    %171 = vmatpush1.msra.mxu0 %v128
    %172 = vmatprep.subr.mxu0 0.0
    %173 = vmatpush1.msra.mxu0 %v127
    %174 = vmatprep.subr.mxu0 0.0
    %175 = vmatpush1.msra.mxu0 %v126
    %176 = vmatprep.subr.mxu0 0.0
    %177 = vmatpush2.msra.mxu0 0.0
    %178 = vmatprep.subr.mxu0 0.0
    %179 = vmatpush2.msra.mxu0 0.0
    %180 = vmatprep.subr.mxu0 0.0
    %181 = vmatpush2.msra.mxu0 0.0
    %182 = vmatprep.subr.mxu0 0.0
    %183 = vmatpush2.msra.mxu0 0.0
    %184 = vmatprep.subr.mxu0 0.0
    %185 = vmatpush2.msra.mxu0 0.0
    %186 = vmatprep.subr.mxu0 0.0
    %187 = vmatpush2.msra.mxu0 0.0
    %188 = vmatprep.subr.mxu0 0.0
    %189 = vmatpush2.msra.mxu0 0.0
    %190 = vmatprep.subr.mxu0 0.0
    %191 = vmatpush2.msra.mxu0 0.0
    %192 = vmatprep.subr.mxu0 0.0
    %193 = vmatpush2.msra.mxu0 0.0
    %194 = vmatprep.subr.mxu0 0.0
    %195 = vmatpush2.msra.mxu0 0.0
    %196 = vmatprep.subr.mxu0 0.0
    %197 = vmatpush2.msra.mxu0 0.0
    %198 = vmatprep.subr.mxu0 0.0
    %199 = vmatpush2.msra.mxu0 0.0
    %200 = vmatprep.subr.mxu0 0.0
    %201 = vmatpush2.msra.mxu0 0.0
    %202 = vmatprep.subr.mxu0 0.0
    %203 = vmatpush2.msra.mxu0 0.0
    %204 = vmatprep.subr.mxu0 0.0
    %205 = vmatpush2.msra.mxu0 0.0
    %206 = vmatprep.subr.mxu0 0.0
    %207 = vmatpush2.msra.mxu0 0.0
    %208 = vmatprep.mubr.f32.mxu0 0.0
    %209 = vmatmul.mubr.f32.gmra.mxu0 %v139
    %v210 = vpop.f32.mrf.mxu0
    %v211 = vadd.f32 %v135, %v210
    %v212 = vpop.f32.mrf.mxu0
    %213 = vmatprep.mubr.f32.mxu0 0.0
    %214 = vmatmul.mubr.f32.gmra.mxu0 %v142
    %v215 = vpop.f32.mrf.mxu0
    %v216 = vadd.f32 %v135, %v215
    %v217 = vpop.f32.mrf.mxu0
    %218 = vdwg.mxu0
    %v219 = vmax.f32 %v211, 0.0
    %v220 = vmax.f32 %v216, 0.0
    %v221 = vld [vmem:[#allocation13] sm:$0xff]
    %v222 = vld [vmem:[#allocation13 + $0x8] sm:$0xff]
    %v223 = vld [vmem:[#allocation13 + $0x10] sm:$0xff]
    %v224 = vld [vmem:[#allocation13 + $0x18] sm:$0xff]
    %v225 = vld [vmem:[#allocation13 + $0x20] sm:$0xff]
    %v226 = vld [vmem:[#allocation13 + $0x28] sm:$0xff]
    %v227 = vld [vmem:[%s8] sm:$0x1]
    %v229 = vlaneseq
    %v230 = vshrl.u32 %v229, 7
    %v231 = vsub.s32 0, %v230
    %v232 = vrot.slane %v227, %v231
    %vm234 = vcmask 392192
    %v236 = vsel %vm234, %v219, 0
    %v239 = vsel %vm234, %v220, 0
    %241 = vmatprep.subr.mxu0 0.0
    %242 = vmatpush1.msra.mxu0 0.0
    %243 = vmatprep.subr.mxu0 0.0
    %244 = vmatpush1.msra.mxu0 0.0
    %245 = vmatprep.subr.mxu0 0.0
    %246 = vmatpush1.msra.mxu0 0.0
    %247 = vmatprep.subr.mxu0 0.0
    %248 = vmatpush1.msra.mxu0 0.0
    %249 = vmatprep.subr.mxu0 0.0
    %250 = vmatpush1.msra.mxu0 0.0
    %251 = vmatprep.subr.mxu0 0.0
    %252 = vmatpush1.msra.mxu0 0.0
    %253 = vmatprep.subr.mxu0 0.0
    %254 = vmatpush1.msra.mxu0 0.0
    %255 = vmatprep.subr.mxu0 0.0
    %256 = vmatpush1.msra.mxu0 0.0
    %257 = vmatprep.subr.mxu0 0.0
    %258 = vmatpush1.msra.mxu0 0.0
    %259 = vmatprep.subr.mxu0 0.0
    %260 = vmatpush1.msra.mxu0 0.0
    %261 = vmatprep.subr.mxu0 0.0
    %262 = vmatpush1.msra.mxu0 %v226
    %263 = vmatprep.subr.mxu0 0.0
    %264 = vmatpush1.msra.mxu0 %v225
    %265 = vmatprep.subr.mxu0 0.0
    %266 = vmatpush1.msra.mxu0 %v224
    %267 = vmatprep.subr.mxu0 0.0
    %268 = vmatpush1.msra.mxu0 %v223
    %269 = vmatprep.subr.mxu0 0.0
    %270 = vmatpush1.msra.mxu0 %v222
    %271 = vmatprep.subr.mxu0 0.0
    %272 = vmatpush1.msra.mxu0 %v221
    %273 = vmatprep.subr.mxu0 0.0
    %274 = vmatpush2.msra.mxu0 0.0
    %275 = vmatprep.subr.mxu0 0.0
    %276 = vmatpush2.msra.mxu0 0.0
    %277 = vmatprep.subr.mxu0 0.0
    %278 = vmatpush2.msra.mxu0 0.0
    %279 = vmatprep.subr.mxu0 0.0
    %280 = vmatpush2.msra.mxu0 0.0
    %281 = vmatprep.subr.mxu0 0.0
    %282 = vmatpush2.msra.mxu0 0.0
    %283 = vmatprep.subr.mxu0 0.0
    %284 = vmatpush2.msra.mxu0 0.0
    %285 = vmatprep.subr.mxu0 0.0
    %286 = vmatpush2.msra.mxu0 0.0
    %287 = vmatprep.subr.mxu0 0.0
    %288 = vmatpush2.msra.mxu0 0.0
    %289 = vmatprep.subr.mxu0 0.0
    %290 = vmatpush2.msra.mxu0 0.0
    %291 = vmatprep.subr.mxu0 0.0
    %292 = vmatpush2.msra.mxu0 0.0
    %293 = vmatprep.subr.mxu0 0.0
    %294 = vmatpush2.msra.mxu0 0.0
    %295 = vmatprep.subr.mxu0 0.0
    %296 = vmatpush2.msra.mxu0 0.0
    %297 = vmatprep.subr.mxu0 0.0
    %298 = vmatpush2.msra.mxu0 0.0
    %299 = vmatprep.subr.mxu0 0.0
    %300 = vmatpush2.msra.mxu0 0.0
    %301 = vmatprep.subr.mxu0 0.0
    %302 = vmatpush2.msra.mxu0 0.0
    %303 = vmatprep.subr.mxu0 0.0
    %304 = vmatpush2.msra.mxu0 0.0
    %305 = vmatprep.mubr.f32.mxu0 0.0
    %306 = vmatmul.mubr.f32.gmra.mxu0 %v236
    %v307 = vpop.f32.mrf.mxu0
    %v308 = vadd.f32 %v232, %v307
    %v309 = vpop.f32.mrf.mxu0
    %310 = vmatprep.mubr.f32.mxu0 0.0
    %311 = vmatmul.mubr.f32.gmra.mxu0 %v239
    %v312 = vpop.f32.mrf.mxu0
    %v313 = vadd.f32 %v232, %v312
    %v314 = vpop.f32.mrf.mxu0
    %315 = vdwg.mxu0
    %v316 = vmax.f32 %v308, 0.0
    %v317 = vmax.f32 %v313, 0.0
    %v318 = vld [vmem:[#allocation5] sm:$0xff]
    %v319 = vld [vmem:[#allocation5 + $0x8] sm:$0xff]
    %v320 = vld [vmem:[#allocation5 + $0x10] sm:$0xff]
    %v321 = vld [vmem:[#allocation8] sm:$0xff]
    %v322 = vld [vmem:[#allocation8 + $0x8] sm:$0xff]
    %v323 = vld [vmem:[#allocation8 + $0x10] sm:$0xff]
    %325 = vset.pattern.permute.xlu0 0
    %326 = vperm.xlu0 %325, %v321
    %v327 = vpop.permute.xlu0 %326
    %330 = vset.pattern.permute.xlu0 0
    %331 = vperm.xlu0 %330, %v322
    %v332 = vpop.permute.xlu0 %331
    %335 = vset.pattern.permute.xlu0 0
    %336 = vperm.xlu0 %335, %v323
    %v337 = vpop.permute.xlu0 %336
    %vm339 = vcmask 130048
    %v341 = vsel %vm339, %v318, 0
    %v344 = vsel %vm339, %v319, 0
    %v347 = vsel %vm339, %v320, 0
    %349 = vmatprep.subr.mxu0 0.0
    %350 = vmatpush1.msra.mxu0 0.0
    %351 = vmatprep.subr.mxu0 0.0
    %352 = vmatpush1.msra.mxu0 0.0
    %353 = vmatprep.subr.mxu0 0.0
    %354 = vmatpush1.msra.mxu0 0.0
    %355 = vmatprep.subr.mxu0 0.0
    %356 = vmatpush1.msra.mxu0 0.0
    %357 = vmatprep.subr.mxu0 0.0
    %358 = vmatpush1.msra.mxu0 0.0
    %359 = vmatprep.subr.mxu0 0.0
    %360 = vmatpush1.msra.mxu0 0.0
    %361 = vmatprep.subr.mxu0 0.0
    %362 = vmatpush1.msra.mxu0 0.0
    %363 = vmatprep.subr.mxu0 0.0
    %364 = vmatpush1.msra.mxu0 0.0
    %365 = vmatprep.subr.mxu0 0.0
    %366 = vmatpush1.msra.mxu0 0.0
    %367 = vmatprep.subr.mxu0 0.0
    %368 = vmatpush1.msra.mxu0 0.0
    %369 = vmatprep.subr.mxu0 0.0
    %370 = vmatpush1.msra.mxu0 0.0
    %371 = vmatprep.subr.mxu0 0.0
    %372 = vmatpush1.msra.mxu0 0.0
    %373 = vmatprep.subr.mxu0 0.0
    %374 = vmatpush1.msra.mxu0 0.0
    %375 = vmatprep.subr.mxu0 0.0
    %376 = vmatpush1.msra.mxu0 0.0
    %377 = vmatprep.subr.mxu0 0.0
    %378 = vmatpush1.msra.mxu0 %v317
    %379 = vmatprep.subr.mxu0 0.0
    %380 = vmatpush1.msra.mxu0 %v316
    %381 = vmatprep.subr.mxu0 0.0
    %382 = vmatpush2.msra.mxu0 0.0
    %383 = vmatprep.subr.mxu0 0.0
    %384 = vmatpush2.msra.mxu0 0.0
    %385 = vmatprep.subr.mxu0 0.0
    %386 = vmatpush2.msra.mxu0 0.0
    %387 = vmatprep.subr.mxu0 0.0
    %388 = vmatpush2.msra.mxu0 0.0
    %389 = vmatprep.subr.mxu0 0.0
    %390 = vmatpush2.msra.mxu0 0.0
    %391 = vmatprep.subr.mxu0 0.0
    %392 = vmatpush2.msra.mxu0 0.0
    %393 = vmatprep.subr.mxu0 0.0
    %394 = vmatpush2.msra.mxu0 0.0
    %395 = vmatprep.subr.mxu0 0.0
    %396 = vmatpush2.msra.mxu0 0.0
    %397 = vmatprep.subr.mxu0 0.0
    %398 = vmatpush2.msra.mxu0 0.0
    %399 = vmatprep.subr.mxu0 0.0
    %400 = vmatpush2.msra.mxu0 0.0
    %401 = vmatprep.subr.mxu0 0.0
    %402 = vmatpush2.msra.mxu0 0.0
    %403 = vmatprep.subr.mxu0 0.0
    %404 = vmatpush2.msra.mxu0 0.0
    %405 = vmatprep.subr.mxu0 0.0
    %406 = vmatpush2.msra.mxu0 0.0
    %407 = vmatprep.subr.mxu0 0.0
    %408 = vmatpush2.msra.mxu0 0.0
    %409 = vmatprep.subr.mxu0 0.0
    %410 = vmatpush2.msra.mxu0 0.0
    %411 = vmatprep.subr.mxu0 0.0
    %412 = vmatpush2.msra.mxu0 0.0
    %413 = vmatprep.mubr.f32.mxu0 0.0
    %414 = vmatmul.mubr.f32.gmra.mxu0 %v341
    %v415 = vpop.f32.mrf.mxu0
    %v416 = vadd.f32 %v327, %v415
    %v417 = vpop.f32.mrf.mxu0
    %418 = vmatprep.mubr.f32.mxu0 0.0
    %419 = vmatmul.mubr.f32.gmra.mxu0 %v344
    %v420 = vpop.f32.mrf.mxu0
    %v421 = vadd.f32 %v332, %v420
    %v422 = vpop.f32.mrf.mxu0
    %423 = vmatprep.mubr.f32.mxu0 0.0
    %424 = vmatmul.mubr.f32.gmra.mxu0 %v347
    %v425 = vpop.f32.mrf.mxu0
    %v426 = vadd.f32 %v337, %v425
    %v427 = vpop.f32.mrf.mxu0
    %428 = vdwg.mxu0
    %v429 = vmax.f32 %v416, 0.0
    %v430 = vmax.f32 %v421, 0.0
    %v431 = vmax.f32 %v426, 0.0
    %v432 = vld [vmem:[#allocation7] sm:$0xff]
    %v433 = vld [vmem:[#allocation10] sm:$0xff]
    %435 = vset.pattern.permute.xlu0 0
    %436 = vperm.xlu0 %435, %v433
    %v437 = vpop.permute.xlu0 %436
    %vm439 = vcmask 195584
    %v441 = vsel %vm439, %v432, 0
    %443 = vmatprep.subr.mxu0 0.0
    %444 = vmatpush1.msra.mxu0 0.0
    %445 = vmatprep.subr.mxu0 0.0
    %446 = vmatpush1.msra.mxu0 0.0
    %447 = vmatprep.subr.mxu0 0.0
    %448 = vmatpush1.msra.mxu0 0.0
    %449 = vmatprep.subr.mxu0 0.0
    %450 = vmatpush1.msra.mxu0 0.0
    %451 = vmatprep.subr.mxu0 0.0
    %452 = vmatpush1.msra.mxu0 0.0
    %453 = vmatprep.subr.mxu0 0.0
    %454 = vmatpush1.msra.mxu0 0.0
    %455 = vmatprep.subr.mxu0 0.0
    %456 = vmatpush1.msra.mxu0 0.0
    %457 = vmatprep.subr.mxu0 0.0
    %458 = vmatpush1.msra.mxu0 0.0
    %459 = vmatprep.subr.mxu0 0.0
    %460 = vmatpush1.msra.mxu0 0.0
    %461 = vmatprep.subr.mxu0 0.0
    %462 = vmatpush1.msra.mxu0 0.0
    %463 = vmatprep.subr.mxu0 0.0
    %464 = vmatpush1.msra.mxu0 0.0
    %465 = vmatprep.subr.mxu0 0.0
    %466 = vmatpush1.msra.mxu0 0.0
    %467 = vmatprep.subr.mxu0 0.0
    %468 = vmatpush1.msra.mxu0 0.0
    %469 = vmatprep.subr.mxu0 0.0
    %470 = vmatpush1.msra.mxu0 %v431
    %471 = vmatprep.subr.mxu0 0.0
    %472 = vmatpush1.msra.mxu0 %v430
    %473 = vmatprep.subr.mxu0 0.0
    %474 = vmatpush1.msra.mxu0 %v429
    %475 = vmatprep.subr.mxu0 0.0
    %476 = vmatpush2.msra.mxu0 0.0
    %477 = vmatprep.subr.mxu0 0.0
    %478 = vmatpush2.msra.mxu0 0.0
    %479 = vmatprep.subr.mxu0 0.0
    %480 = vmatpush2.msra.mxu0 0.0
    %481 = vmatprep.subr.mxu0 0.0
    %482 = vmatpush2.msra.mxu0 0.0
    %483 = vmatprep.subr.mxu0 0.0
    %484 = vmatpush2.msra.mxu0 0.0
    %485 = vmatprep.subr.mxu0 0.0
    %486 = vmatpush2.msra.mxu0 0.0
    %487 = vmatprep.subr.mxu0 0.0
    %488 = vmatpush2.msra.mxu0 0.0
    %489 = vmatprep.subr.mxu0 0.0
    %490 = vmatpush2.msra.mxu0 0.0
    %491 = vmatprep.subr.mxu0 0.0
    %492 = vmatpush2.msra.mxu0 0.0
    %493 = vmatprep.subr.mxu0 0.0
    %494 = vmatpush2.msra.mxu0 0.0
    %495 = vmatprep.subr.mxu0 0.0
    %496 = vmatpush2.msra.mxu0 0.0
    %497 = vmatprep.subr.mxu0 0.0
    %498 = vmatpush2.msra.mxu0 0.0
    %499 = vmatprep.subr.mxu0 0.0
    %500 = vmatpush2.msra.mxu0 0.0
    %501 = vmatprep.subr.mxu0 0.0
    %502 = vmatpush2.msra.mxu0 0.0
    %503 = vmatprep.subr.mxu0 0.0
    %504 = vmatpush2.msra.mxu0 0.0
    %505 = vmatprep.subr.mxu0 0.0
    %506 = vmatpush2.msra.mxu0 0.0
    %507 = vmatprep.mubr.f32.mxu0 0.0
    %508 = vmatmul.mubr.f32.gmra.mxu0 %v441
    %v509 = vpop.f32.mrf.mxu0
    %v510 = vadd.f32 %v437, %v509
    %v511 = vpop.f32.mrf.mxu0
    %512 = vdwg.mxu0
    %v513 = vmax.f32 %v510, 0.0
    %514 = vst.msk [vmem:[#allocation14] sm:$0xff] %vm339, %v513
    // Predicated region
    $region66: #{fwd.1} parent=1 // pred_check
      _
    $region67: #{fwd.1} parent=1 // pred_check_branch
      %516 = sbr.rel (0) target = $region69
    $region68: #{fwd.1} parent=1 // pred_region
      %s518 = ssub.s32 128, 128
      %519 = vsyncadd [#allocation4], %s518
      %s521 = sshll.u32 [#allocation14], 4
      %s522 = int_to_ptr.vmem [resolvable:$true] %s521
      %524 = dma.vmem_to_hbm [thread:$0]  %s522, 128, %s9, [#allocation4]
    $region69: #{fwd.1} parent=1 // pred_fallthru
      _
    // Predicated region
    $region70: #{fwd.1} parent=1 // pred_check
      _
    $region71: #{fwd.1} parent=1 // pred_check_branch
      %526 = sbr.rel (0) target = $region73
    $region72: #{fwd.1} parent=1 // pred_region
      %527 = dma.done [#allocation4], 128
    $region73: #{fwd.1} parent=1 // pred_fallthru
      _
    %528 = vsyncpa [#allocation3], 1
    %529 = vsyncpa [#allocation6], 1
    %530 = vsyncpa [#allocation9], 1
    %531 = vsyncpa [#allocation12], 1
    %532 = vsyncpa [#allocation4], 1

</llo_original>
